<compile_context>
chip_gen: v6e
topology: v6e:2x2x1
jax: 0.10.0
libtpu: 0.0.40
codegen_flags: <defaults>
</compile_context>

<pallas_src>
import functools

import jax
import jax.numpy as jnp
from jax.experimental import pallas as pl
from jax.experimental.pallas import tpu as pltpu

_LANE = 128


def _chip_config():
    """Returns (vmem_limit_bytes, block_bytes, num_tensorcores) per generation."""
    try:
        vmem = int(pltpu.get_tpu_info().vmem_capacity_bytes)
    except Exception:
        vmem = 64 << 20  # conservative (v7x-sized) fallback
    if vmem >= (128 << 20):
        # v5e / v6e: 128 MiB VMEM, single TensorCore -> big slabs, no grid cap.
        return 96 << 20, 12 << 20, 1
    # v7x: 64 MiB VMEM per TC, 2 TensorCores -> temp-aware smaller slabs.
    return 48 << 20, 6 << 20, 2


# ---------------------------------------------------------------------------
# Path 1: fused kernel, one (nb, C, L) slab per grid step (full L per block).
# ---------------------------------------------------------------------------
def _scse_fused_kernel(x_ref, w1t_ref, b1_ref, w2t_ref, b2_ref, ws_ref, bs_ref,
                       o_ref, *, inv_L):
    x = x_ref[...]                                   # (NB, C, L), native dtype
    xf = x.astype(jnp.float32)                       # f32 math / accumulation

    # ---- channel SE: global average pool over L + two 1x1-conv matmuls ----
    pooled = jnp.sum(xf, axis=2) * inv_L                              # (NB, C)
    z1 = jnp.maximum(
        jnp.dot(pooled, w1t_ref[...], preferred_element_type=jnp.float32)
        + b1_ref[...], 0.0)                                           # (NB, Cr)
    cse = jax.nn.sigmoid(
        jnp.dot(z1, w2t_ref[...], preferred_element_type=jnp.float32)
        + b2_ref[...])                                                # (NB, C)

    # ---- spatial SE: 1x1 conv C->1 as broadcast-mul + sublane reduction ----
    sse = jax.nn.sigmoid(
        jnp.sum(xf * ws_ref[...][None, :, :], axis=1) + bs_ref[0])    # (NB, L)

    # ---- fused combine, no materialized block-sized gate array ----
    o_ref[...] = (xf * cse[:, :, None] + xf * sse[:, None, :]).astype(o_ref.dtype)


def _scse_fused(x, w1t, b1r, w2t, b2r, wsc, bss, block_bytes, vmem_limit, num_tc):
    N, C, L = x.shape
    C_red = w1t.shape[1]
    itemsize = x.dtype.itemsize

    nb = int(max(1, min(block_bytes // (C * L * itemsize), N)))
    # Load-balance across TensorCores: shrink nb just enough so the grid
    # length is a multiple of the TC count (no blunt N//2 cap on single-TC).
    while nb > 1 and pl.cdiv(N, nb) % num_tc != 0:
        nb -= 1
    grid = (pl.cdiv(N, nb),)

    full = lambda shape: pl.BlockSpec(shape, lambda b: tuple(0 for _ in shape))
    cost = pl.CostEstimate(
        flops=int(6 * N * C * L + 4 * N * C * C_red),
        transcendentals=int(N * (C + L)),
        bytes_accessed=int(2 * N * C * L * itemsize),
    )

    return pl.pallas_call(
        functools.partial(_scse_fused_kernel, inv_L=1.0 / L),
        out_shape=jax.ShapeDtypeStruct((N, C, L), x.dtype),
        grid_spec=pltpu.PrefetchScalarGridSpec(
            num_scalar_prefetch=0,
            grid=grid,
            in_specs=[
                pl.BlockSpec((nb, C, L), lambda b: (b, 0, 0)),        # x slab
                full((C, C_red)),                                     # W1^T
                full((1, C_red)),                                     # b1
                full((C_red, C)),                                     # W2^T
                full((1, C)),                                         # b2
                full((C, 1)),                                         # Ws
                pl.BlockSpec(memory_space=pltpu.MemorySpace.SMEM),    # bs scalar
            ],
            out_specs=pl.BlockSpec((nb, C, L), lambda b: (b, 0, 0)),
        ),
        compiler_params=pltpu.CompilerParams(
            dimension_semantics=("parallel",),
            vmem_limit_bytes=vmem_limit,
        ),
        cost_estimate=cost,
    )(x, w1t, b1r, w2t, b2r, wsc, bss)


# ---------------------------------------------------------------------------
# Path 2: large C*L fallback — tiny pooled/cSE gate in plain XLA, then an
# L-tiled Pallas kernel applying sSE + combine.
# ---------------------------------------------------------------------------
def _scse_combine_kernel(x_ref, cse_ref, ws_ref, bs_ref, o_ref):
    x = x_ref[...]                                   # (1, C, lt)
    xf = x.astype(jnp.float32)
    sse = jax.nn.sigmoid(
        jnp.sum(xf * ws_ref[...][None, :, :], axis=1) + bs_ref[0])    # (1, lt)
    o_ref[...] = (xf * cse_ref[...][:, :, None]
                  + xf * sse[:, None, :]).astype(o_ref.dtype)


def _scse_l_tiled(x, w1t, b1r, w2t, b2r, wsc, bss, block_bytes, vmem_limit, num_tc):
    N, C, L = x.shape
    itemsize = x.dtype.itemsize

    # Phase 1 (tiny): pooled mean + cSE gate via plain XLA (one streaming read
    # of x + two small matmuls), kept in f32.
    pooled = jnp.mean(x.astype(jnp.float32), axis=-1)                 # (N, C)
    z1 = jnp.maximum(pooled @ w1t + b1r, 0.0)
    cse = jax.nn.sigmoid(z1 @ w2t + b2r)                              # (N, C)

    # Phase 2: L-tiled sSE + combine.  lt is a multiple of 128 (or full L).
    lt = max(_LANE, (block_bytes // (C * itemsize)) // _LANE * _LANE)
    if lt >= L:
        lt = L
    lt = int(lt)
    grid = (N, pl.cdiv(L, lt))

    cost = pl.CostEstimate(
        flops=int(5 * N * C * L),
        transcendentals=int(N * L),
        bytes_accessed=int(2 * N * C * L * itemsize + N * C * 4),
    )

    return pl.pallas_call(
        _scse_combine_kernel,
        out_shape=jax.ShapeDtypeStruct((N, C, L), x.dtype),
        grid_spec=pltpu.PrefetchScalarGridSpec(
            num_scalar_prefetch=0,
            grid=grid,
            in_specs=[
                pl.BlockSpec((1, C, lt), lambda b, l: (b, 0, l)),     # x tile
                pl.BlockSpec((1, C), lambda b, l: (b, 0)),            # cSE gate
                pl.BlockSpec((C, 1), lambda b, l: (0, 0)),            # Ws
                pl.BlockSpec(memory_space=pltpu.MemorySpace.SMEM),    # bs scalar
            ],
            out_specs=pl.BlockSpec((1, C, lt), lambda b, l: (b, 0, l)),
        ),
        compiler_params=pltpu.CompilerParams(
            dimension_semantics=("parallel", "parallel"),
            vmem_limit_bytes=vmem_limit,
        ),
        cost_estimate=cost,
    )(x, cse, wsc, bss)


# ---------------------------------------------------------------------------
# Public wrapper.
# ---------------------------------------------------------------------------
def scse_attention_1d(x, w1, b1, w2, b2, ws, bs, *, block_bytes=None):
    """x: (N, C, L) float32/bfloat16.

    w1: (C_red, C), b1: (C_red,), w2: (C, C_red), b2: (C,), ws: (1, C), bs: (1,)
    """
    N, C, L = x.shape
    C_red = w1.shape[0]
    itemsize = x.dtype.itemsize

    vmem_limit, default_block, num_tc = _chip_config()
    if block_bytes is None:
        block_bytes = default_block

    # Parameters pre-shaped (f32) for batched matmuls / broadcast.
    w1t = jnp.asarray(w1, jnp.float32).T.reshape(C, C_red)   # pooled @ W1^T
    w2t = jnp.asarray(w2, jnp.float32).T.reshape(C_red, C)   # hidden @ W2^T
    b1r = jnp.asarray(b1, jnp.float32).reshape(1, C_red)
    b2r = jnp.asarray(b2, jnp.float32).reshape(1, C)
    wsc = jnp.asarray(ws, jnp.float32).reshape(C, 1)
    bss = jnp.asarray(bs, jnp.float32).reshape(1,)

    per_batch = C * L * itemsize
    if per_batch <= block_bytes:
        return _scse_fused(x, w1t, b1r, w2t, b2r, wsc, bss,
                           block_bytes, vmem_limit, num_tc)
    return _scse_l_tiled(x, w1t, b1r, w2t, b2r, wsc, bss,
                         block_bytes, vmem_limit, num_tc)


def _reference(x, w1, b1, w2, b2, ws, bs):
    pooled = jnp.mean(x, axis=-1, keepdims=True)                      # (N, C, 1)
    z1 = jnp.maximum(jnp.einsum('rc,ncl->nrl', w1, pooled) + b1[None, :, None], 0.0)
    cse = jax.nn.sigmoid(jnp.einsum('cr,nrl->ncl', w2, z1) + b2[None, :, None])
    sse = jax.nn.sigmoid(jnp.einsum('oc,ncl->nol', ws, x) + bs[None, :, None])
    return x * cse + x * sse


if __name__ == "__main__":
    # Small shapes consistent with SCSEAttention(C_in=32, reduction=16, type='1d').
    # L=160 (not a multiple of 128) exercises the no-pad masked-store path.
    N, C, L, reduction = 4, 32, 160, 16
    C_red = C // reduction

    key = jax.random.PRNGKey(0)
    kx, k1, k2, k3, k4, k5, k6 = jax.random.split(key, 7)

    x = jax.random.normal(kx, (N, C, L), dtype=jnp.float32)

    # Deterministic parameter init (shapes match nn.Conv1d(..., kernel_size=1)).
    w1 = jax.random.normal(k1, (C_red, C), dtype=jnp.float32) * 0.1   # cSE conv1
    b1 = jax.random.normal(k2, (C_red,), dtype=jnp.float32) * 0.1
    w2 = jax.random.normal(k3, (C, C_red), dtype=jnp.float32) * 0.1   # cSE conv2
    b2 = jax.random.normal(k4, (C,), dtype=jnp.float32) * 0.1
    ws = jax.random.normal(k5, (1, C), dtype=jnp.float32) * 0.1       # sSE conv
    bs = jax.random.normal(k6, (1,), dtype=jnp.float32) * 0.1

    ref = _reference(x, w1, b1, w2, b2, ws, bs)

    # Path 1: fused whole-L blocks.
    out = jax.block_until_ready(scse_attention_1d(x, w1, b1, w2, b2, ws, bs))
    assert out.shape == (N, C, L)
    assert jnp.allclose(out, ref, atol=1e-5, rtol=1e-5), "fused path mismatch"

    # Path 2: force the L-tiled fallback by shrinking the block budget so that
    # a single example's C*L slab no longer fits (exercises the large-shape path).
    out2 = jax.block_until_ready(
        scse_attention_1d(x, w1, b1, w2, b2, ws, bs, block_bytes=16 * 1024))
    assert out2.shape == (N, C, L)
    assert jnp.allclose(out2, ref, atol=1e-5, rtol=1e-5), "L-tiled path mismatch"

    print("KERNEL_OK")
</pallas_src>

<mosaic_0001>
module attributes {stable_mosaic.version = 11 : i64} {
  func.func @_scse_fused_kernel(%arg0: i32, %arg1: memref<3x32x160xf32, #tpu.memory_space<vmem>>, %arg2: memref<32x2xf32, #tpu.memory_space<vmem>>, %arg3: memref<1x2xf32, #tpu.memory_space<vmem>>, %arg4: memref<2x32xf32, #tpu.memory_space<vmem>>, %arg5: memref<1x32xf32, #tpu.memory_space<vmem>>, %arg6: memref<32x1xf32, #tpu.memory_space<vmem>>, %arg7: memref<1xf32, #tpu.memory_space<smem>>, %arg8: memref<3x32x160xf32, #tpu.memory_space<vmem>>) attributes {dimension_semantics = [#tpu.dimension_semantics<parallel>], iteration_bounds = array<i64: 2>, scalar_prefetch = 0 : i64, scratch_operands = 0 : i64, tpu.core_type = #tpu.core_type<tc>, window_params = [{transform_indices = @transform_0, window_bounds = array<i64: 3, 32, 160>}, {pipeline_mode = #tpu.pipeline_mode<synchronous>, transform_indices = @transform_1, window_bounds = array<i64: 32, 2>}, {pipeline_mode = #tpu.pipeline_mode<synchronous>, transform_indices = @transform_2, window_bounds = array<i64: 1, 2>}, {pipeline_mode = #tpu.pipeline_mode<synchronous>, transform_indices = @transform_3, window_bounds = array<i64: 2, 32>}, {pipeline_mode = #tpu.pipeline_mode<synchronous>, transform_indices = @transform_4, window_bounds = array<i64: 1, 32>}, {pipeline_mode = #tpu.pipeline_mode<synchronous>, transform_indices = @transform_5, window_bounds = array<i64: 32, 1>}, {transform_indices = @transform_6, window_bounds = array<i64: 1>}, {transform_indices = @transform_7, window_bounds = array<i64: 3, 32, 160>}]} {
    %c0 = arith.constant 0 : index
    %c0_0 = arith.constant 0 : index
    %c0_1 = arith.constant 0 : index
    %0 = vector.load %arg1[%c0, %c0_0, %c0_1] : memref<3x32x160xf32, #tpu.memory_space<vmem>>, vector<3x32x160xf32>
    %cst = arith.constant dense<0.000000e+00> : vector<3x32xf32>
    %1 = vector.multi_reduction <add>, %0, %cst [2] : vector<3x32x160xf32> to vector<3x32xf32>
    %cst_2 = arith.constant 6.250000e-03 : f32
    %2 = vector.broadcast %cst_2 : f32 to vector<3x32xf32>
    %3 = arith.mulf %1, %2 : vector<3x32xf32>
    %c0_3 = arith.constant 0 : index
    %c0_4 = arith.constant 0 : index
    %4 = vector.load %arg2[%c0_3, %c0_4] : memref<32x2xf32, #tpu.memory_space<vmem>>, vector<32x2xf32>
    %cst_5 = arith.constant dense<0.000000e+00> : vector<3x2xf32>
    %5 = tpu.matmul %3, %4, %cst_5 {dimension_numbers = #tpu.dot_dimension_numbers<[1], [0], [0], [1], [0, 0, 1, 1], [], []>} : vector<3x32xf32>, vector<32x2xf32>, vector<3x2xf32> -> vector<3x2xf32>
    %c0_6 = arith.constant 0 : index
    %c0_7 = arith.constant 0 : index
    %6 = vector.load %arg3[%c0_6, %c0_7] : memref<1x2xf32, #tpu.memory_space<vmem>>, vector<1x2xf32>
    %7 = vector.broadcast %6 : vector<1x2xf32> to vector<3x2xf32>
    %8 = arith.addf %5, %7 : vector<3x2xf32>
    %cst_8 = arith.constant 0.000000e+00 : f32
    %9 = vector.broadcast %cst_8 : f32 to vector<3x2xf32>
    %10 = arith.maximumf %8, %9 : vector<3x2xf32>
    %c0_9 = arith.constant 0 : index
    %c0_10 = arith.constant 0 : index
    %11 = vector.load %arg4[%c0_9, %c0_10] : memref<2x32xf32, #tpu.memory_space<vmem>>, vector<2x32xf32>
    %cst_11 = arith.constant dense<0.000000e+00> : vector<3x32xf32>
    %12 = tpu.matmul %10, %11, %cst_11 {dimension_numbers = #tpu.dot_dimension_numbers<[1], [0], [0], [1], [0, 0, 1, 1], [], []>} : vector<3x2xf32>, vector<2x32xf32>, vector<3x32xf32> -> vector<3x32xf32>
    %c0_12 = arith.constant 0 : index
    %c0_13 = arith.constant 0 : index
    %13 = vector.load %arg5[%c0_12, %c0_13] : memref<1x32xf32, #tpu.memory_space<vmem>>, vector<1x32xf32>
    %14 = vector.broadcast %13 : vector<1x32xf32> to vector<3x32xf32>
    %15 = arith.addf %12, %14 : vector<3x32xf32>
    %16 = arith.negf %15 : vector<3x32xf32>
    %17 = math.exp %16 : vector<3x32xf32>
    %cst_14 = arith.constant 1.000000e+00 : f32
    %18 = vector.broadcast %cst_14 : f32 to vector<3x32xf32>
    %19 = arith.addf %18, %17 : vector<3x32xf32>
    %20 = arith.divf %18, %19 : vector<3x32xf32>
    %c0_15 = arith.constant 0 : index
    %c0_16 = arith.constant 0 : index
    %21 = vector.load %arg6[%c0_15, %c0_16] : memref<32x1xf32, #tpu.memory_space<vmem>>, vector<32x1xf32>
    %22 = vector.shape_cast %21 : vector<32x1xf32> to vector<1x32x1xf32>
    %23 = vector.broadcast %22 : vector<1x32x1xf32> to vector<3x32x160xf32>
    %24 = arith.mulf %0, %23 : vector<3x32x160xf32>
    %cst_17 = arith.constant dense<0.000000e+00> : vector<3x160xf32>
    %25 = vector.multi_reduction <add>, %24, %cst_17 [1] : vector<3x32x160xf32> to vector<3x160xf32>
    %c0_18 = arith.constant 0 : index
    %26 = memref.load %arg7[%c0_18] : memref<1xf32, #tpu.memory_space<smem>>
    %27 = vector.broadcast %26 : f32 to vector<3x160xf32>
    %28 = arith.addf %25, %27 : vector<3x160xf32>
    %29 = arith.negf %28 : vector<3x160xf32>
    %30 = math.exp %29 : vector<3x160xf32>
    %cst_19 = arith.constant 1.000000e+00 : f32
    %31 = vector.broadcast %cst_19 : f32 to vector<3x160xf32>
    %32 = arith.addf %31, %30 : vector<3x160xf32>
    %33 = arith.divf %31, %32 : vector<3x160xf32>
    %34 = vector.shape_cast %20 : vector<3x32xf32> to vector<3x32x1xf32>
    %35 = vector.broadcast %34 : vector<3x32x1xf32> to vector<3x32x160xf32>
    %36 = arith.mulf %0, %35 : vector<3x32x160xf32>
    %37 = vector.shape_cast %33 : vector<3x160xf32> to vector<3x1x160xf32>
    %38 = vector.broadcast %37 : vector<3x1x160xf32> to vector<3x32x160xf32>
    %39 = arith.mulf %0, %38 : vector<3x32x160xf32>
    %40 = arith.addf %36, %39 : vector<3x32x160xf32>
    %c0_20 = arith.constant 0 : index
    %c0_21 = arith.constant 0 : index
    %c0_22 = arith.constant 0 : index
    %41 = vector.load %arg8[%c0_20, %c0_21, %c0_22] : memref<3x32x160xf32, #tpu.memory_space<vmem>>, vector<3x32x160xf32>
    tpu.vector_store %arg8[%c0_20, %c0_21, %c0_22], %40 {strides = array<i32>} : memref<3x32x160xf32, #tpu.memory_space<vmem>>, vector<3x32x160xf32>,
    return
  }
  func.func @transform_0(%arg0: i32) -> (i32, i32, i32) {
    %c0_i32 = arith.constant 0 : i32
    %c0_i32_0 = arith.constant 0 : i32
    %c0_i32_1 = arith.constant 0 : i32
    return %arg0, %c0_i32, %c0_i32_0 : i32, i32, i32
  }
  func.func @transform_1(%arg0: i32) -> (i32, i32) {
    %c0_i32 = arith.constant 0 : i32
    %c0_i32_0 = arith.constant 0 : i32
    %c0_i32_1 = arith.constant 0 : i32
    return %c0_i32, %c0_i32_0 : i32, i32
  }
  func.func @transform_2(%arg0: i32) -> (i32, i32) {
    %c0_i32 = arith.constant 0 : i32
    %c0_i32_0 = arith.constant 0 : i32
    %c0_i32_1 = arith.constant 0 : i32
    return %c0_i32, %c0_i32_0 : i32, i32
  }
  func.func @transform_3(%arg0: i32) -> (i32, i32) {
    %c0_i32 = arith.constant 0 : i32
    %c0_i32_0 = arith.constant 0 : i32
    %c0_i32_1 = arith.constant 0 : i32
    return %c0_i32, %c0_i32_0 : i32, i32
  }
  func.func @transform_4(%arg0: i32) -> (i32, i32) {
    %c0_i32 = arith.constant 0 : i32
    %c0_i32_0 = arith.constant 0 : i32
    %c0_i32_1 = arith.constant 0 : i32
    return %c0_i32, %c0_i32_0 : i32, i32
  }
  func.func @transform_5(%arg0: i32) -> (i32, i32) {
    %c0_i32 = arith.constant 0 : i32
    %c0_i32_0 = arith.constant 0 : i32
    %c0_i32_1 = arith.constant 0 : i32
    return %c0_i32, %c0_i32_0 : i32, i32
  }
  func.func @transform_6(%arg0: i32) -> i32 {
    %c0_i32 = arith.constant 0 : i32
    %c0_i32_0 = arith.constant 0 : i32
    return %c0_i32 : i32
  }
  func.func @transform_7(%arg0: i32) -> (i32, i32, i32) {
    %c0_i32 = arith.constant 0 : i32
    %c0_i32_0 = arith.constant 0 : i32
    %c0_i32_1 = arith.constant 0 : i32
    return %arg0, %c0_i32, %c0_i32_0 : i32, i32, i32
  }
}

</mosaic_0001>

<llo_original>
// kernel: tpu_custom_call.1
$region0: #{tpu_custom_call.1}
  #allocation0 [shape = 'u32[]', space=smem, size = 0x4, offset = 0x4, fixed_abs, tag = 'smem constant byte address 0x4 - core index']
  #allocation1 [shape = 'u32[144,128]{1,0:T(1,128)}', space=vmem, size = 0x12000, scoped, tag = 'internal scratch']
  #allocation2 [shape = 'f32[1]{0:T(128)S(6)}', space=smem, size = 0x200, scoped, tag = 'scoped memory for tpu_custom_call.1']
  %s0 = inlined_call_operand.hbm [shape: f32[4,32,160], index: 0, kind: input, shape index: {}]
  %s1 = inlined_call_operand.vmem [shape: f32[32,2], index: 1, kind: input, shape index: {}]
  %s2 = inlined_call_operand.vmem [shape: f32[1,2], index: 2, kind: input, shape index: {}]
  %s3 = inlined_call_operand.vmem [shape: f32[2,32], index: 3, kind: input, shape index: {}]
  %s4 = inlined_call_operand.vmem [shape: f32[1,32], index: 4, kind: input, shape index: {}]
  %s5 = inlined_call_operand.vmem [shape: f32[32,1], index: 5, kind: input, shape index: {}]
  %s6 = inlined_call_operand.<no memory space> [shape: f32[1], index: 6, kind: input, shape index: {}]
  %s7 = inlined_call_operand.hbm [shape: f32[4,32,160], index: 7, kind: output, shape index: {}]
  %s8 = sld [smem:[#allocation0]]
  $region65: #{tpu_custom_call.1} parent=0
    _
  %s10 = ssub.s32 1, %s8
  %s11 = scalar_select 0, %s10, %s8
  %12 = sst [smem:[#allocation2]] %s6
  $region1: #{tpu_custom_call.1} parent=0
    #allocation3 [shape = 'u8[196608]{0}', space=vmem, size = 0x30000, scoped, tag = 'input window, operand 0']
    #allocation4 [shape = 's32[2]{0}', space=sflag, size = 0x8, scoped, tag = 'scoped memory for tpu_custom_call.1']
    #allocation5 [shape = 's32[2]{0}', space=sflag, size = 0x8, scoped, tag = 'scoped memory for tpu_custom_call.1']
    #allocation6 [shape = 'u8[196608]{0}', space=vmem, size = 0x30000, scoped, tag = 'output window, operand 0']
    %13 = vsyncpa [#allocation4], 0
    %s14 = scalar_lea.sflag [#allocation4], 1
    %15 = vsyncpa %s14, 0
    %16 = vsyncpa [#allocation5], 0
    %s17 = scalar_lea.sflag [#allocation5], 1
    %18 = vsyncpa %s17, 0
    loop: start=0, step=1, limit=4
    $region2: #{tpu_custom_call.1} parent=1 // loop_pre_header
      _
    $region3: #{tpu_custom_call.1} parent=1 // loop_header
      %s20 = sphi 0, %s24
      %p21 = scmp.ge.s32.totalorder %s20, 4
      %s30 = sphi 0, %s32
      %s33 = sphi 0, %s30
      %s34 = sphi 0, %s33
      %s50 = sphi 0, %s34
      %s54 = sphi 0, %s54
      %s56 = sphi 0, %s54
      %s57 = sphi 0, %s56
      %s71 = sphi 0, %s57
      %s75 = sphi 0, %s75
      %s77 = sphi 0, %s75
      %s78 = sphi 0, %s77
      %s92 = sphi 0, %s78
      %s96 = sphi 0, %s96
      %s98 = sphi 0, %s96
      %s99 = sphi 0, %s98
      %s113 = sphi 0, %s99
      %s117 = sphi 0, %s117
      %s119 = sphi 0, %s117
      %s120 = sphi 0, %s119
      %s134 = sphi 0, %s120
      %s138 = sphi 0, %s138
      %s140 = sphi 0, %s138
      %s141 = sphi 0, %s140
      %s155 = sphi 0, %s141
      %s159 = sphi 0, %s159
      %s161 = sphi 0, %s159
      %s162 = sphi 0, %s161
      %s176 = sphi 0, %s162
      %s182 = sphi 0, %s184
      %s185 = sphi 0, %s182
      %s186 = sphi 0, %s185
      %s202 = sphi 0, %s186
    $region4: #{tpu_custom_call.1} parent=1 // loop_header_branch
      %23 = sbr.rel (%p21) target = $region8
    $region5: #{tpu_custom_call.1} parent=1 // loop_body
      %s25 = ssub.s32 %s20, 1
      %s26 = ssub.s32 %s20, 2
      %s27 = sadd.s32 %s20, 1
      %s28 = ssub.s32 %s20, %s27
      %p29 = scmp.eq.s32.totalorder %s28, 0
      %s31 = sadd.s32 %s30, 1
      %s32 = scalar_select %p29, %s30, %s31
      %p35 = pneg %p29
      %p36 = scmp.eq.s32.totalorder %s20, 1
      %p37 = por %p35, %p36
      %p38 = scmp.ne.s32.totalorder %s30, %s33
      %p39 = scmp.eq.s32.totalorder %s20, 0
      %p40 = por %p38, %p39
      %p41 = scmp.ne.s32.totalorder %s30, %s33
      %p42 = scmp.eq.s32.totalorder %s25, 1
      %p43 = por %p41, %p42
      %p44 = scmp.ne.s32.totalorder %s33, %s34
      %p45 = scmp.eq.s32.totalorder %s25, 0
      %p46 = por %p44, %p45
      %p47 = scmp.ne.s32.totalorder %s33, %s34
      %p48 = scmp.eq.s32.totalorder %s26, 1
      %p49 = por %p47, %p48
      %p51 = scmp.ne.s32.totalorder %s34, %s50
      %p52 = scmp.eq.s32.totalorder %s26, 0
      %p53 = por %p51, %p52
      %s55 = sadd.s32 %s54, 1
      %p58 = scmp.eq.s32.totalorder %s20, 1
      %p59 = scmp.ne.s32.totalorder %s54, %s56
      %p60 = scmp.eq.s32.totalorder %s20, 0
      %p61 = por %p59, %p60
      %p62 = scmp.ne.s32.totalorder %s54, %s56
      %p63 = scmp.eq.s32.totalorder %s25, 1
      %p64 = por %p62, %p63
      %p65 = scmp.ne.s32.totalorder %s56, %s57
      %p66 = scmp.eq.s32.totalorder %s25, 0
      %p67 = por %p65, %p66
      %p68 = scmp.ne.s32.totalorder %s56, %s57
      %p69 = scmp.eq.s32.totalorder %s26, 1
      %p70 = por %p68, %p69
      %p72 = scmp.ne.s32.totalorder %s57, %s71
      %p73 = scmp.eq.s32.totalorder %s26, 0
      %p74 = por %p72, %p73
      %s76 = sadd.s32 %s75, 1
      %p79 = scmp.eq.s32.totalorder %s20, 1
      %p80 = scmp.ne.s32.totalorder %s75, %s77
      %p81 = scmp.eq.s32.totalorder %s20, 0
      %p82 = por %p80, %p81
      %p83 = scmp.ne.s32.totalorder %s75, %s77
      %p84 = scmp.eq.s32.totalorder %s25, 1
      %p85 = por %p83, %p84
      %p86 = scmp.ne.s32.totalorder %s77, %s78
      %p87 = scmp.eq.s32.totalorder %s25, 0
      %p88 = por %p86, %p87
      %p89 = scmp.ne.s32.totalorder %s77, %s78
      %p90 = scmp.eq.s32.totalorder %s26, 1
      %p91 = por %p89, %p90
      %p93 = scmp.ne.s32.totalorder %s78, %s92
      %p94 = scmp.eq.s32.totalorder %s26, 0
      %p95 = por %p93, %p94
      %s97 = sadd.s32 %s96, 1
      %p100 = scmp.eq.s32.totalorder %s20, 1
      %p101 = scmp.ne.s32.totalorder %s96, %s98
      %p102 = scmp.eq.s32.totalorder %s20, 0
      %p103 = por %p101, %p102
      %p104 = scmp.ne.s32.totalorder %s96, %s98
      %p105 = scmp.eq.s32.totalorder %s25, 1
      %p106 = por %p104, %p105
      %p107 = scmp.ne.s32.totalorder %s98, %s99
      %p108 = scmp.eq.s32.totalorder %s25, 0
      %p109 = por %p107, %p108
      %p110 = scmp.ne.s32.totalorder %s98, %s99
      %p111 = scmp.eq.s32.totalorder %s26, 1
      %p112 = por %p110, %p111
      %p114 = scmp.ne.s32.totalorder %s99, %s113
      %p115 = scmp.eq.s32.totalorder %s26, 0
      %p116 = por %p114, %p115
      %s118 = sadd.s32 %s117, 1
      %p121 = scmp.eq.s32.totalorder %s20, 1
      %p122 = scmp.ne.s32.totalorder %s117, %s119
      %p123 = scmp.eq.s32.totalorder %s20, 0
      %p124 = por %p122, %p123
      %p125 = scmp.ne.s32.totalorder %s117, %s119
      %p126 = scmp.eq.s32.totalorder %s25, 1
      %p127 = por %p125, %p126
      %p128 = scmp.ne.s32.totalorder %s119, %s120
      %p129 = scmp.eq.s32.totalorder %s25, 0
      %p130 = por %p128, %p129
      %p131 = scmp.ne.s32.totalorder %s119, %s120
      %p132 = scmp.eq.s32.totalorder %s26, 1
      %p133 = por %p131, %p132
      %p135 = scmp.ne.s32.totalorder %s120, %s134
      %p136 = scmp.eq.s32.totalorder %s26, 0
      %p137 = por %p135, %p136
      %s139 = sadd.s32 %s138, 1
      %p142 = scmp.eq.s32.totalorder %s20, 1
      %p143 = scmp.ne.s32.totalorder %s138, %s140
      %p144 = scmp.eq.s32.totalorder %s20, 0
      %p145 = por %p143, %p144
      %p146 = scmp.ne.s32.totalorder %s138, %s140
      %p147 = scmp.eq.s32.totalorder %s25, 1
      %p148 = por %p146, %p147
      %p149 = scmp.ne.s32.totalorder %s140, %s141
      %p150 = scmp.eq.s32.totalorder %s25, 0
      %p151 = por %p149, %p150
      %p152 = scmp.ne.s32.totalorder %s140, %s141
      %p153 = scmp.eq.s32.totalorder %s26, 1
      %p154 = por %p152, %p153
      %p156 = scmp.ne.s32.totalorder %s141, %s155
      %p157 = scmp.eq.s32.totalorder %s26, 0
      %p158 = por %p156, %p157
      %s160 = sadd.s32 %s159, 1
      %p163 = scmp.eq.s32.totalorder %s20, 1
      %p164 = scmp.ne.s32.totalorder %s159, %s161
      %p165 = scmp.eq.s32.totalorder %s20, 0
      %p166 = por %p164, %p165
      %p167 = scmp.ne.s32.totalorder %s159, %s161
      %p168 = scmp.eq.s32.totalorder %s25, 1
      %p169 = por %p167, %p168
      %p170 = scmp.ne.s32.totalorder %s161, %s162
      %p171 = scmp.eq.s32.totalorder %s25, 0
      %p172 = por %p170, %p171
      %p173 = scmp.ne.s32.totalorder %s161, %s162
      %p174 = scmp.eq.s32.totalorder %s26, 1
      %p175 = por %p173, %p174
      %p177 = scmp.ne.s32.totalorder %s162, %s176
      %p178 = scmp.eq.s32.totalorder %s26, 0
      %p179 = por %p177, %p178
      %s180 = ssub.s32 %s20, %s27
      %p181 = scmp.eq.s32.totalorder %s180, 0
      %s183 = sadd.s32 %s182, 1
      %s184 = scalar_select %p181, %s182, %s183
      %p187 = pneg %p181
      %p188 = scmp.eq.s32.totalorder %s20, 1
      %p189 = por %p187, %p188
      %p190 = scmp.ne.s32.totalorder %s182, %s185
      %p191 = scmp.eq.s32.totalorder %s20, 0
      %p192 = por %p190, %p191
      %p193 = scmp.ne.s32.totalorder %s182, %s185
      %p194 = scmp.eq.s32.totalorder %s25, 1
      %p195 = por %p193, %p194
      %p196 = scmp.ne.s32.totalorder %s185, %s186
      %p197 = scmp.eq.s32.totalorder %s25, 0
      %p198 = por %p196, %p197
      %p199 = scmp.ne.s32.totalorder %s185, %s186
      %p200 = scmp.eq.s32.totalorder %s26, 1
      %p201 = por %p199, %p200
      %p203 = scmp.ne.s32.totalorder %s186, %s202
      %p204 = scmp.eq.s32.totalorder %s26, 0
      %p205 = por %p203, %p204
      %p206 = scmp.le.s32.totalorder 1, %s20
      %p207 = scmp.lt.s32.totalorder %s20, 3
      %p208 = pnand %p206, %p207
      %p209 = pneg %p208
      // Predicated region
      $region9: #{tpu_custom_call.1} parent=5 // pred_check
        _
      $region10: #{tpu_custom_call.1} parent=5 // pred_check_branch
        %211 = sbr.rel (%p208) target = $region12
      $region11: #{tpu_custom_call.1} parent=5 // pred_region
        %s212 = ssub.s32 %s20, 1
        // Predicated region
        $region13: #{tpu_custom_call.1} parent=11 // pred_check
          %p213 = pneg %p67
        $region14: #{tpu_custom_call.1} parent=11 // pred_check_branch
          %215 = sbr.rel (%p213) target = $region16
        $region15: #{tpu_custom_call.1} parent=11 // pred_region
          _
        $region16: #{tpu_custom_call.1} parent=11 // pred_fallthru
          _
        // Predicated region
        $region17: #{tpu_custom_call.1} parent=11 // pred_check
          %p216 = pneg %p88
        $region18: #{tpu_custom_call.1} parent=11 // pred_check_branch
          %218 = sbr.rel (%p216) target = $region20
        $region19: #{tpu_custom_call.1} parent=11 // pred_region
          _
        $region20: #{tpu_custom_call.1} parent=11 // pred_fallthru
          _
        // Predicated region
        $region21: #{tpu_custom_call.1} parent=11 // pred_check
          %p219 = pneg %p109
        $region22: #{tpu_custom_call.1} parent=11 // pred_check_branch
          %221 = sbr.rel (%p219) target = $region24
        $region23: #{tpu_custom_call.1} parent=11 // pred_region
          _
        $region24: #{tpu_custom_call.1} parent=11 // pred_fallthru
          _
        // Predicated region
        $region25: #{tpu_custom_call.1} parent=11 // pred_check
          %p222 = pneg %p130
        $region26: #{tpu_custom_call.1} parent=11 // pred_check_branch
          %224 = sbr.rel (%p222) target = $region28
        $region27: #{tpu_custom_call.1} parent=11 // pred_region
          _
        $region28: #{tpu_custom_call.1} parent=11 // pred_fallthru
          _
        // Predicated region
        $region29: #{tpu_custom_call.1} parent=11 // pred_check
          %p225 = pneg %p151
        $region30: #{tpu_custom_call.1} parent=11 // pred_check_branch
          %227 = sbr.rel (%p225) target = $region32
        $region31: #{tpu_custom_call.1} parent=11 // pred_region
          _
        $region32: #{tpu_custom_call.1} parent=11 // pred_fallthru
          _
        // Predicated region
        $region33: #{tpu_custom_call.1} parent=11 // pred_check
          %p228 = pneg %p172
        $region34: #{tpu_custom_call.1} parent=11 // pred_check_branch
          %230 = sbr.rel (%p228) target = $region36
        $region35: #{tpu_custom_call.1} parent=11 // pred_region
          _
        $region36: #{tpu_custom_call.1} parent=11 // pred_fallthru
          _
      $region12: #{tpu_custom_call.1} parent=5 // pred_fallthru
        _
      %p231 = scmp.lt.s32.totalorder %s20, 2
      // Predicated region
      $region37: #{tpu_custom_call.1} parent=5 // pred_check
        %p232 = pneg %p231
      $region38: #{tpu_custom_call.1} parent=5 // pred_check_branch
        %234 = sbr.rel (%p232) target = $region40
      $region39: #{tpu_custom_call.1} parent=5 // pred_region
        // Predicated region
        $region41: #{tpu_custom_call.1} parent=39 // pred_check
          %p235 = pneg %p40
        $region42: #{tpu_custom_call.1} parent=39 // pred_check_branch
          %237 = sbr.rel (%p235) target = $region44
        $region43: #{tpu_custom_call.1} parent=39 // pred_region
          %s238 = sand.u32 %s30, 1
          %s239 = scalar_lea.sflag [#allocation4], %s238
          %s240 = sand.u32 %s30, 1
          %s241 = smul.addr %s240, 192
          %s242 = scalar_lea.vmem [#allocation3], %s241
          %s243 = smul.u32 3, %s20
          %s244 = ssub.s32 4, %s243
          %p245 = scmp.lt.s32.totalorder %s244, 3
          %s246 = scalar_select %p245, %s244, 3
          %s247 = smul.u32 128, %s246
          %s248 = smul.u32 %s247, 4
          %s249 = smul.u32 %s248, 2
          %s251 = ssub.s32 3072, %s249
          %252 = vsyncadd %s239, %s251
          %p253 = scmp.ne.s32.totalorder 0, %s249
          %s254 = smul.addr %s243, 8
          %s255 = smul.addr %s254, 128
          %s256 = scalar_lea.hbm %s0, %s255
          %s257 = smul.u32 %s246, 4
          %s258 = smul.u32 16, %s257
          %s259 = sshll.u32 %s242, 4
          %s260 = int_to_ptr.vmem [resolvable:$true] %s259
          %s261 = sshll.u32 %s258, 4
          %265 = dma.hbm_to_vmem [thread:$0]  (%p253), %s256, %s261, %s260, %s239, 256, 256, 16
        $region44: #{tpu_custom_call.1} parent=39 // pred_fallthru
          _
      $region40: #{tpu_custom_call.1} parent=5 // pred_fallthru
        _
      %p266 = scmp.le.s32.totalorder 1, %s20
      %p267 = scmp.lt.s32.totalorder %s20, 3
      %p268 = pnand %p266, %p267
      %p269 = pneg %p268
      // Predicated region
      $region45: #{tpu_custom_call.1} parent=5 // pred_check
        _
      $region46: #{tpu_custom_call.1} parent=5 // pred_check_branch
        %271 = sbr.rel (%p268) target = $region48
      $region47: #{tpu_custom_call.1} parent=5 // pred_region
        %s272 = ssub.s32 %s20, 1
        %s273 = sand.u32 %s33, 1
        %s274 = scalar_lea.sflag [#allocation4], %s273
        %s275 = sand.u32 %s33, 1
        %s276 = smul.addr %s275, 192
        %s277 = scalar_lea.vmem [#allocation3], %s276
        // Predicated region
        $region49: #{tpu_custom_call.1} parent=47 // pred_check
          %p278 = pneg %p46
        $region50: #{tpu_custom_call.1} parent=47 // pred_check_branch
          %280 = sbr.rel (%p278) target = $region52
        $region51: #{tpu_custom_call.1} parent=47 // pred_region
          %281 = dma.done %s274, 3072
        $region52: #{tpu_custom_call.1} parent=47 // pred_fallthru
          _
        %s282 = sand.u32 %s33, 1
        %s283 = scalar_lea.sflag [#allocation4], %s282
        %s284 = sand.u32 %s33, 1
        %s285 = smul.addr %s284, 192
        %s286 = scalar_lea.vmem [#allocation3], %s285
        %p287 = pneg %p46
        %p288 = pneg %p43
        %p289 = pneg %p67
        %p290 = pneg %p64
        %p291 = pneg %p88
        %p292 = pneg %p85
        %p293 = pneg %p109
        %p294 = pneg %p106
        %p295 = pneg %p130
        %p296 = pneg %p127
        %p297 = pneg %p151
        %p298 = pneg %p148
        %p299 = pneg %p172
        %p300 = pneg %p169
        %p301 = pneg %p198
        %p302 = pneg %p195
        %s303 = sand.u32 %s185, 1
        %s304 = scalar_lea.sflag [#allocation5], %s303
        %s305 = sand.u32 %s185, 1
        %s306 = smul.addr %s305, 192
        %s307 = scalar_lea.vmem [#allocation6], %s306
        %s308 = smul.u32 3, %s25
        %s309 = ssub.s32 4, %s308
        %p310 = scmp.lt.s32.totalorder %s309, 3
        %s311 = scalar_select %p310, %s309, 3
        %s312 = smul.u32 128, %s311
        %s313 = smul.u32 %s312, 4
        %s314 = smul.u32 %s313, 2
        %s315 = smul.u32 3, %s25
        %s316 = ssub.s32 4, %s315
        %p317 = scmp.lt.s32.totalorder %s316, 3
        %s318 = scalar_select %p317, %s316, 3
        %s319 = smul.u32 128, %s318
        %s320 = smul.u32 %s319, 4
        %s321 = smul.u32 %s320, 2
        %v322 = vld [vmem:[%s277] sm:$0xff]
        %v323 = vld [vmem:[%s277 + $0x8] sm:$0xff]
        %v324 = vld [vmem:[%s277 + $0x10] sm:$0xff]
        %v325 = vld [vmem:[%s277 + $0x18] sm:$0xff]
        %v326 = vld [vmem:[%s277 + $0x20] sm:$0xff]
        %v327 = vld [vmem:[%s277 + $0x28] sm:$0xff]
        %v328 = vld [vmem:[%s277 + $0x30] sm:$0xff]
        %v329 = vld [vmem:[%s277 + $0x38] sm:$0xff]
        %v330 = vld [vmem:[%s277 + $0x40] sm:$0xff]
        %v331 = vld [vmem:[%s277 + $0x48] sm:$0xff]
        %v332 = vld [vmem:[%s277 + $0x50] sm:$0xff]
        %v333 = vld [vmem:[%s277 + $0x58] sm:$0xff]
        %v334 = vld [vmem:[%s277 + $0x60] sm:$0xff]
        %v335 = vld [vmem:[%s277 + $0x68] sm:$0xff]
        %v336 = vld [vmem:[%s277 + $0x70] sm:$0xff]
        %v337 = vld [vmem:[%s277 + $0x78] sm:$0xff]
        %v338 = vld [vmem:[%s277 + $0x80] sm:$0xff]
        %v339 = vld [vmem:[%s277 + $0x88] sm:$0xff]
        %v340 = vld [vmem:[%s277 + $0x90] sm:$0xff]
        %v341 = vld [vmem:[%s277 + $0x98] sm:$0xff]
        %v342 = vld [vmem:[%s277 + $0xa0] sm:$0xff]
        %v343 = vld [vmem:[%s277 + $0xa8] sm:$0xff]
        %v344 = vld [vmem:[%s277 + $0xb0] sm:$0xff]
        %v345 = vld [vmem:[%s277 + $0xb8] sm:$0xff]
        %vm346 = vcmask 261120
        %v347 = vsel %vm346, %v323, 0.0
        %v348 = vadd.f32 %v322, %v347
        %349 = vadd.xlane.f32.xlu0 %v348
        %v350 = vpop.xlane.xlu0 %349
        %v351 = vsel %vm346, %v325, 0.0
        %v352 = vadd.f32 %v324, %v351
        %353 = vadd.xlane.f32.xlu0 %v352
        %v354 = vpop.xlane.xlu0 %353
        %v355 = vsel %vm346, %v327, 0.0
        %v356 = vadd.f32 %v326, %v355
        %357 = vadd.xlane.f32.xlu0 %v356
        %v358 = vpop.xlane.xlu0 %357
        %v359 = vsel %vm346, %v329, 0.0
        %v360 = vadd.f32 %v328, %v359
        %361 = vadd.xlane.f32.xlu0 %v360
        %v362 = vpop.xlane.xlu0 %361
        %v363 = vsel %vm346, %v331, 0.0
        %v364 = vadd.f32 %v330, %v363
        %365 = vadd.xlane.f32.xlu0 %v364
        %v366 = vpop.xlane.xlu0 %365
        %v367 = vsel %vm346, %v333, 0.0
        %v368 = vadd.f32 %v332, %v367
        %369 = vadd.xlane.f32.xlu0 %v368
        %v370 = vpop.xlane.xlu0 %369
        %v371 = vsel %vm346, %v335, 0.0
        %v372 = vadd.f32 %v334, %v371
        %373 = vadd.xlane.f32.xlu0 %v372
        %v374 = vpop.xlane.xlu0 %373
        %v375 = vsel %vm346, %v337, 0.0
        %v376 = vadd.f32 %v336, %v375
        %377 = vadd.xlane.f32.xlu0 %v376
        %v378 = vpop.xlane.xlu0 %377
        %v379 = vsel %vm346, %v339, 0.0
        %v380 = vadd.f32 %v338, %v379
        %381 = vadd.xlane.f32.xlu0 %v380
        %v382 = vpop.xlane.xlu0 %381
        %v383 = vsel %vm346, %v341, 0.0
        %v384 = vadd.f32 %v340, %v383
        %385 = vadd.xlane.f32.xlu0 %v384
        %v386 = vpop.xlane.xlu0 %385
        %v387 = vsel %vm346, %v343, 0.0
        %v388 = vadd.f32 %v342, %v387
        %389 = vadd.xlane.f32.xlu0 %v388
        %v390 = vpop.xlane.xlu0 %389
        %v391 = vsel %vm346, %v345, 0.0
        %v392 = vadd.f32 %v344, %v391
        %393 = vadd.xlane.f32.xlu0 %v392
        %v394 = vpop.xlane.xlu0 %393
        %v395 = vmul.f32 %v350, 0.00625
        %v396 = vmul.f32 %v354, 0.00625
        %v397 = vmul.f32 %v358, 0.00625
        %v398 = vmul.f32 %v362, 0.00625
        %v399 = vmul.f32 %v366, 0.00625
        %v400 = vmul.f32 %v370, 0.00625
        %v401 = vmul.f32 %v374, 0.00625
        %v402 = vmul.f32 %v378, 0.00625
        %v403 = vmul.f32 %v382, 0.00625
        %v404 = vmul.f32 %v386, 0.00625
        %v405 = vmul.f32 %v390, 0.00625
        %v406 = vmul.f32 %v394, 0.00625
        %v407 = vld [vmem:[%s1] sm:$0xff]
        %v408 = vld [vmem:[%s1 + $0x8] sm:$0xff]
        %v409 = vld [vmem:[%s1 + $0x10] sm:$0xff]
        %v410 = vld [vmem:[%s1 + $0x18] sm:$0xff]
        %v411 = vld [vmem:[%s2] sm:$0x1]
        %v413 = vlaneseq
        %v414 = vshrl.u32 %v413, 7
        %v415 = vsub.s32 0, %v414
        %v416 = vrot.slane %v411, %v415
        %v430 = vlaneseq
        %v431 = vand.u32 %v430, 127
        %v432 = vlaneseq
        %v433 = vshrl.u32 %v432, 7
        %v434 = vsub.s32 %v431, %v433
        %v435 = vrot.slane %v395, %v434
        %v436 = vadd.s32 %v431, 4294967288
        %v437 = vlaneseq
        %v438 = vshrl.u32 %v437, 7
        %v439 = vsub.s32 %v436, %v438
        %v440 = vrot.slane %v396, %v439
        %vm441 = vcmask 130112
        %v442 = vsel %vm441, %v440, %v435
        %v443 = vadd.s32 %v431, 4294967280
        %v444 = vlaneseq
        %v445 = vshrl.u32 %v444, 7
        %v446 = vsub.s32 %v443, %v445
        %v447 = vrot.slane %v397, %v446
        %vm448 = vcmask 195712
        %v449 = vsel %vm448, %v447, %v442
        %v450 = vadd.s32 %v431, 4294967272
        %v451 = vlaneseq
        %v452 = vshrl.u32 %v451, 7
        %v453 = vsub.s32 %v450, %v452
        %v454 = vrot.slane %v398, %v453
        %vm455 = vcmask 261312
        %v456 = vsel %vm455, %v454, %v449
        %v457 = vlaneseq
        %v458 = vshrl.u32 %v457, 7
        %v459 = vsub.s32 %v431, %v458
        %v460 = vrot.slane %v399, %v459
        %v461 = vlaneseq
        %v462 = vshrl.u32 %v461, 7
        %v463 = vsub.s32 %v436, %v462
        %v464 = vrot.slane %v400, %v463
        %v465 = vsel %vm441, %v464, %v460
        %v466 = vlaneseq
        %v467 = vshrl.u32 %v466, 7
        %v468 = vsub.s32 %v443, %v467
        %v469 = vrot.slane %v401, %v468
        %v470 = vsel %vm448, %v469, %v465
        %v471 = vlaneseq
        %v472 = vshrl.u32 %v471, 7
        %v473 = vsub.s32 %v450, %v472
        %v474 = vrot.slane %v402, %v473
        %v475 = vsel %vm455, %v474, %v470
        %v476 = vlaneseq
        %v477 = vshrl.u32 %v476, 7
        %v478 = vsub.s32 %v431, %v477
        %v479 = vrot.slane %v403, %v478
        %v480 = vlaneseq
        %v481 = vshrl.u32 %v480, 7
        %v482 = vsub.s32 %v436, %v481
        %v483 = vrot.slane %v404, %v482
        %v484 = vsel %vm441, %v483, %v479
        %v485 = vlaneseq
        %v486 = vshrl.u32 %v485, 7
        %v487 = vsub.s32 %v443, %v486
        %v488 = vrot.slane %v405, %v487
        %v489 = vsel %vm448, %v488, %v484
        %v490 = vlaneseq
        %v491 = vshrl.u32 %v490, 7
        %v492 = vsub.s32 %v450, %v491
        %v493 = vrot.slane %v406, %v492
        %v494 = vsel %vm455, %v493, %v489
        %vm495 = vcmask 1041409
        %v496 = vsel %vm495, %v475, %v456
        %vm497 = vcmask 1042434
        %v498 = vsel %vm497, %v494, %v496
        %v499 = vsel %vm346, %v498, 0
        %501 = vmatprep.subr.mxu0 0.0
        %502 = vmatpush1.msra.mxu0 0.0
        %503 = vmatprep.subr.mxu0 0.0
        %504 = vmatpush1.msra.mxu0 0.0
        %505 = vmatprep.subr.mxu0 0.0
        %506 = vmatpush1.msra.mxu0 0.0
        %507 = vmatprep.subr.mxu0 0.0
        %508 = vmatpush1.msra.mxu0 0.0
        %509 = vmatprep.subr.mxu0 0.0
        %510 = vmatpush1.msra.mxu0 0.0
        %511 = vmatprep.subr.mxu0 0.0
        %512 = vmatpush1.msra.mxu0 0.0
        %513 = vmatprep.subr.mxu0 0.0
        %514 = vmatpush1.msra.mxu0 0.0
        %515 = vmatprep.subr.mxu0 0.0
        %516 = vmatpush1.msra.mxu0 0.0
        %517 = vmatprep.subr.mxu0 0.0
        %518 = vmatpush1.msra.mxu0 0.0
        %519 = vmatprep.subr.mxu0 0.0
        %520 = vmatpush1.msra.mxu0 0.0
        %521 = vmatprep.subr.mxu0 0.0
        %522 = vmatpush1.msra.mxu0 0.0
        %523 = vmatprep.subr.mxu0 0.0
        %524 = vmatpush1.msra.mxu0 0.0
        %525 = vmatprep.subr.mxu0 0.0
        %526 = vmatpush1.msra.mxu0 %v410
        %527 = vmatprep.subr.mxu0 0.0
        %528 = vmatpush1.msra.mxu0 %v409
        %529 = vmatprep.subr.mxu0 0.0
        %530 = vmatpush1.msra.mxu0 %v408
        %531 = vmatprep.subr.mxu0 0.0
        %532 = vmatpush1.msra.mxu0 %v407
        %533 = vmatprep.subr.mxu0 0.0
        %534 = vmatpush2.msra.mxu0 0.0
        %535 = vmatprep.subr.mxu0 0.0
        %536 = vmatpush2.msra.mxu0 0.0
        %537 = vmatprep.subr.mxu0 0.0
        %538 = vmatpush2.msra.mxu0 0.0
        %539 = vmatprep.subr.mxu0 0.0
        %540 = vmatpush2.msra.mxu0 0.0
        %541 = vmatprep.subr.mxu0 0.0
        %542 = vmatpush2.msra.mxu0 0.0
        %543 = vmatprep.subr.mxu0 0.0
        %544 = vmatpush2.msra.mxu0 0.0
        %545 = vmatprep.subr.mxu0 0.0
        %546 = vmatpush2.msra.mxu0 0.0
        %547 = vmatprep.subr.mxu0 0.0
        %548 = vmatpush2.msra.mxu0 0.0
        %549 = vmatprep.subr.mxu0 0.0
        %550 = vmatpush2.msra.mxu0 0.0
        %551 = vmatprep.subr.mxu0 0.0
        %552 = vmatpush2.msra.mxu0 0.0
        %553 = vmatprep.subr.mxu0 0.0
        %554 = vmatpush2.msra.mxu0 0.0
        %555 = vmatprep.subr.mxu0 0.0
        %556 = vmatpush2.msra.mxu0 0.0
        %557 = vmatprep.subr.mxu0 0.0
        %558 = vmatpush2.msra.mxu0 0.0
        %559 = vmatprep.subr.mxu0 0.0
        %560 = vmatpush2.msra.mxu0 0.0
        %561 = vmatprep.subr.mxu0 0.0
        %562 = vmatpush2.msra.mxu0 0.0
        %563 = vmatprep.subr.mxu0 0.0
        %564 = vmatpush2.msra.mxu0 0.0
        %565 = vmatprep.mubr.f32.mxu0 0.0
        %566 = vmatmul.mubr.f32.gmra.mxu0 %v499
        %v567 = vpop.f32.mrf.mxu0
        %v568 = vadd.f32 %v416, %v567
        %v569 = vpop.f32.mrf.mxu0
        %570 = vdwg.mxu0
        %v571 = vmax.f32 %v568, 0.0
        %v572 = vld [vmem:[%s3] sm:$0x3]
        %v573 = vld [vmem:[%s4] sm:$0x1]
        %v575 = vlaneseq
        %v576 = vshrl.u32 %v575, 7
        %v577 = vsub.s32 0, %v576
        %v578 = vrot.slane %v573, %v577
        %vm580 = vcmask 15360
        %v582 = vsel %vm580, %v571, 0
        %vm584 = vcmask 1041408
        %v586 = vsel %vm584, %v572, 0
        %588 = vmatprep.subr.mxu0 0.0
        %589 = vmatpush1.msra.mxu0 0.0
        %590 = vmatprep.subr.mxu0 0.0
        %591 = vmatpush1.msra.mxu0 0.0
        %592 = vmatprep.subr.mxu0 0.0
        %593 = vmatpush1.msra.mxu0 0.0
        %594 = vmatprep.subr.mxu0 0.0
        %595 = vmatpush1.msra.mxu0 0.0
        %596 = vmatprep.subr.mxu0 0.0
        %597 = vmatpush1.msra.mxu0 0.0
        %598 = vmatprep.subr.mxu0 0.0
        %599 = vmatpush1.msra.mxu0 0.0
        %600 = vmatprep.subr.mxu0 0.0
        %601 = vmatpush1.msra.mxu0 0.0
        %602 = vmatprep.subr.mxu0 0.0
        %603 = vmatpush1.msra.mxu0 0.0
        %604 = vmatprep.subr.mxu0 0.0
        %605 = vmatpush1.msra.mxu0 0.0
        %606 = vmatprep.subr.mxu0 0.0
        %607 = vmatpush1.msra.mxu0 0.0
        %608 = vmatprep.subr.mxu0 0.0
        %609 = vmatpush1.msra.mxu0 0.0
        %610 = vmatprep.subr.mxu0 0.0
        %611 = vmatpush1.msra.mxu0 0.0
        %612 = vmatprep.subr.mxu0 0.0
        %613 = vmatpush1.msra.mxu0 0.0
        %614 = vmatprep.subr.mxu0 0.0
        %615 = vmatpush1.msra.mxu0 0.0
        %616 = vmatprep.subr.mxu0 0.0
        %617 = vmatpush1.msra.mxu0 0.0
        %618 = vmatprep.subr.mxu0 0.0
        %619 = vmatpush1.msra.mxu0 %v586
        %620 = vmatprep.subr.mxu0 0.0
        %621 = vmatpush2.msra.mxu0 0.0
        %622 = vmatprep.subr.mxu0 0.0
        %623 = vmatpush2.msra.mxu0 0.0
        %624 = vmatprep.subr.mxu0 0.0
        %625 = vmatpush2.msra.mxu0 0.0
        %626 = vmatprep.subr.mxu0 0.0
        %627 = vmatpush2.msra.mxu0 0.0
        %628 = vmatprep.subr.mxu0 0.0
        %629 = vmatpush2.msra.mxu0 0.0
        %630 = vmatprep.subr.mxu0 0.0
        %631 = vmatpush2.msra.mxu0 0.0
        %632 = vmatprep.subr.mxu0 0.0
        %633 = vmatpush2.msra.mxu0 0.0
        %634 = vmatprep.subr.mxu0 0.0
        %635 = vmatpush2.msra.mxu0 0.0
        %636 = vmatprep.subr.mxu0 0.0
        %637 = vmatpush2.msra.mxu0 0.0
        %638 = vmatprep.subr.mxu0 0.0
        %639 = vmatpush2.msra.mxu0 0.0
        %640 = vmatprep.subr.mxu0 0.0
        %641 = vmatpush2.msra.mxu0 0.0
        %642 = vmatprep.subr.mxu0 0.0
        %643 = vmatpush2.msra.mxu0 0.0
        %644 = vmatprep.subr.mxu0 0.0
        %645 = vmatpush2.msra.mxu0 0.0
        %646 = vmatprep.subr.mxu0 0.0
        %647 = vmatpush2.msra.mxu0 0.0
        %648 = vmatprep.subr.mxu0 0.0
        %649 = vmatpush2.msra.mxu0 0.0
        %650 = vmatprep.subr.mxu0 0.0
        %651 = vmatpush2.msra.mxu0 0.0
        %652 = vmatprep.mubr.f32.mxu0 0.0
        %653 = vmatmul.mubr.f32.gmra.mxu0 %v582
        %v654 = vpop.f32.mrf.mxu0
        %v655 = vadd.f32 %v578, %v654
        %v656 = vpop.f32.mrf.mxu0
        %657 = vdwg.mxu0
        %v658 = vxor.u32 %v655, 2147483648
        %v659 = vmul.f32 %v658, 1.442695
        %v660 = vpow.pop %v659
        %v661 = vadd.f32 %v660, 1.0
        %v662 = vrcp.pop %v661
        %v663 = vmul.f32 1.0, %v662
        %v664 = vld [vmem:[%s5] sm:$0xff]
        %v665 = vld [vmem:[%s5 + $0x8] sm:$0xff]
        %v666 = vld [vmem:[%s5 + $0x10] sm:$0xff]
        %v667 = vld [vmem:[%s5 + $0x18] sm:$0xff]
        %669 = vset.pattern.permute.xlu0 0
        %670 = vperm.xlu0 %669, %v664
        %v671 = vpop.permute.xlu0 %670
        %674 = vset.pattern.permute.xlu0 0
        %675 = vperm.xlu0 %674, %v665
        %v676 = vpop.permute.xlu0 %675
        %679 = vset.pattern.permute.xlu0 0
        %680 = vperm.xlu0 %679, %v666
        %v681 = vpop.permute.xlu0 %680
        %684 = vset.pattern.permute.xlu0 0
        %685 = vperm.xlu0 %684, %v667
        %v686 = vpop.permute.xlu0 %685
        %v688 = vmul.f32 %v322, %v671
        %v689 = vmul.f32 %v323, %v671
        %v690 = vmul.f32 %v324, %v676
        %v691 = vmul.f32 %v325, %v676
        %v692 = vmul.f32 %v326, %v681
        %v693 = vmul.f32 %v327, %v681
        %v694 = vmul.f32 %v328, %v686
        %v695 = vmul.f32 %v329, %v686
        %v696 = vmul.f32 %v330, %v671
        %v697 = vmul.f32 %v331, %v671
        %v698 = vmul.f32 %v332, %v676
        %v699 = vmul.f32 %v333, %v676
        %v700 = vmul.f32 %v334, %v681
        %v701 = vmul.f32 %v335, %v681
        %v702 = vmul.f32 %v336, %v686
        %v703 = vmul.f32 %v337, %v686
        %v704 = vmul.f32 %v338, %v671
        %v705 = vmul.f32 %v339, %v671
        %v706 = vmul.f32 %v340, %v676
        %v707 = vmul.f32 %v341, %v676
        %v708 = vmul.f32 %v342, %v681
        %v709 = vmul.f32 %v343, %v681
        %v710 = vmul.f32 %v344, %v686
        %v711 = vmul.f32 %v345, %v686
        %v712 = vadd.f32 %v688, %v690
        %v713 = vadd.f32 %v712, %v692
        %v714 = vadd.f32 %v713, %v694
        %v715 = vrot.slane %v714, 4
        %v716 = vadd.f32 %v714, %v715
        %v717 = vrot.slane %v716, 2
        %v718 = vadd.f32 %v716, %v717
        %v719 = vrot.slane %v718, 1
        %v720 = vadd.f32 %v718, %v719
        %v721 = vsel %vm346, %v689, 0.0
        %v722 = vsel %vm346, %v691, 0.0
        %v723 = vadd.f32 %v721, %v722
        %v724 = vsel %vm346, %v693, 0.0
        %v725 = vadd.f32 %v723, %v724
        %v726 = vsel %vm346, %v695, 0.0
        %v727 = vadd.f32 %v725, %v726
        %v728 = vrot.slane %v727, 4
        %v729 = vadd.f32 %v727, %v728
        %v730 = vrot.slane %v729, 2
        %v731 = vadd.f32 %v729, %v730
        %v732 = vrot.slane %v731, 1
        %v733 = vadd.f32 %v731, %v732
        %v734 = vadd.f32 %v696, %v698
        %v735 = vadd.f32 %v734, %v700
        %v736 = vadd.f32 %v735, %v702
        %v737 = vrot.slane %v736, 4
        %v738 = vadd.f32 %v736, %v737
        %v739 = vrot.slane %v738, 2
        %v740 = vadd.f32 %v738, %v739
        %v741 = vrot.slane %v740, 1
        %v742 = vadd.f32 %v740, %v741
        %v743 = vsel %vm346, %v697, 0.0
        %v744 = vsel %vm346, %v699, 0.0
        %v745 = vadd.f32 %v743, %v744
        %v746 = vsel %vm346, %v701, 0.0
        %v747 = vadd.f32 %v745, %v746
        %v748 = vsel %vm346, %v703, 0.0
        %v749 = vadd.f32 %v747, %v748
        %v750 = vrot.slane %v749, 4
        %v751 = vadd.f32 %v749, %v750
        %v752 = vrot.slane %v751, 2
        %v753 = vadd.f32 %v751, %v752
        %v754 = vrot.slane %v753, 1
        %v755 = vadd.f32 %v753, %v754
        %v756 = vadd.f32 %v704, %v706
        %v757 = vadd.f32 %v756, %v708
        %v758 = vadd.f32 %v757, %v710
        %v759 = vrot.slane %v758, 4
        %v760 = vadd.f32 %v758, %v759
        %v761 = vrot.slane %v760, 2
        %v762 = vadd.f32 %v760, %v761
        %v763 = vrot.slane %v762, 1
        %v764 = vadd.f32 %v762, %v763
        %v765 = vsel %vm346, %v705, 0.0
        %v766 = vsel %vm346, %v707, 0.0
        %v767 = vadd.f32 %v765, %v766
        %v768 = vsel %vm346, %v709, 0.0
        %v769 = vadd.f32 %v767, %v768
        %v770 = vsel %vm346, %v711, 0.0
        %v771 = vadd.f32 %v769, %v770
        %v772 = vrot.slane %v771, 4
        %v773 = vadd.f32 %v771, %v772
        %v774 = vrot.slane %v773, 2
        %v775 = vadd.f32 %v773, %v774
        %v776 = vrot.slane %v775, 1
        %v777 = vadd.f32 %v775, %v776
        %s778 = sld [smem:[#allocation2]]
        %v779 = vstv %s778
        %v780 = vadd.f32 %v720, %v779
        %v781 = vadd.f32 %v733, %v779
        %v782 = vadd.f32 %v742, %v779
        %v783 = vadd.f32 %v755, %v779
        %v784 = vadd.f32 %v764, %v779
        %v785 = vadd.f32 %v777, %v779
        %v786 = vxor.u32 %v780, 2147483648
        %v787 = vxor.u32 %v781, 2147483648
        %v788 = vxor.u32 %v782, 2147483648
        %v789 = vxor.u32 %v783, 2147483648
        %v790 = vxor.u32 %v784, 2147483648
        %v791 = vxor.u32 %v785, 2147483648
        %v792 = vmul.f32 %v786, 1.442695
        %v793 = vpow.pop %v792
        %v794 = vmul.f32 %v787, 1.442695
        %v795 = vpow.pop %v794
        %v796 = vmul.f32 %v788, 1.442695
        %v797 = vpow.pop %v796
        %v798 = vmul.f32 %v789, 1.442695
        %v799 = vpow.pop %v798
        %v800 = vmul.f32 %v790, 1.442695
        %v801 = vpow.pop %v800
        %v802 = vmul.f32 %v791, 1.442695
        %v803 = vpow.pop %v802
        %v804 = vadd.f32 %v793, 1.0
        %v805 = vadd.f32 %v795, 1.0
        %v806 = vadd.f32 %v797, 1.0
        %v807 = vadd.f32 %v799, 1.0
        %v808 = vadd.f32 %v801, 1.0
        %v809 = vadd.f32 %v803, 1.0
        %v810 = vrcp.pop %v804
        %v811 = vmul.f32 1.0, %v810
        %v812 = vrcp.pop %v805
        %v813 = vmul.f32 1.0, %v812
        %v814 = vrcp.pop %v806
        %v815 = vmul.f32 1.0, %v814
        %v816 = vrcp.pop %v807
        %v817 = vmul.f32 1.0, %v816
        %v818 = vrcp.pop %v808
        %v819 = vmul.f32 1.0, %v818
        %v820 = vrcp.pop %v809
        %v821 = vmul.f32 1.0, %v820
        %v822 = vlaneseq
        %v823 = vshrl.u32 %v822, 7
        %v824 = vsub.s32 0, %v823
        %v825 = vrot.slane %v663, %v824
        %827 = vbcast.lane.b32.xlu0 %v825, 256
        %v828 = vpop.permute.xlu0 %827
        %s830 = sor.u32 256, 8
        %831 = vbcast.lane.b32.xlu0 %v825, %s830
        %v832 = vpop.permute.xlu0 %831
        %s834 = sor.u32 256, 16
        %835 = vbcast.lane.b32.xlu0 %v825, %s834
        %v836 = vpop.permute.xlu0 %835
        %s838 = sor.u32 256, 24
        %839 = vbcast.lane.b32.xlu0 %v825, %s838
        %v840 = vpop.permute.xlu0 %839
        %v841 = vlaneseq
        %v842 = vshrl.u32 %v841, 7
        %v843 = vsub.s32 1, %v842
        %v844 = vrot.slane %v663, %v843
        %846 = vbcast.lane.b32.xlu0 %v844, 256
        %v847 = vpop.permute.xlu0 %846
        %s849 = sor.u32 256, 8
        %850 = vbcast.lane.b32.xlu0 %v844, %s849
        %v851 = vpop.permute.xlu0 %850
        %s853 = sor.u32 256, 16
        %854 = vbcast.lane.b32.xlu0 %v844, %s853
        %v855 = vpop.permute.xlu0 %854
        %s857 = sor.u32 256, 24
        %858 = vbcast.lane.b32.xlu0 %v844, %s857
        %v859 = vpop.permute.xlu0 %858
        %v860 = vlaneseq
        %v861 = vshrl.u32 %v860, 7
        %v862 = vsub.s32 2, %v861
        %v863 = vrot.slane %v663, %v862
        %865 = vbcast.lane.b32.xlu0 %v863, 256
        %v866 = vpop.permute.xlu0 %865
        %s868 = sor.u32 256, 8
        %869 = vbcast.lane.b32.xlu0 %v863, %s868
        %v870 = vpop.permute.xlu0 %869
        %s872 = sor.u32 256, 16
        %873 = vbcast.lane.b32.xlu0 %v863, %s872
        %v874 = vpop.permute.xlu0 %873
        %s876 = sor.u32 256, 24
        %877 = vbcast.lane.b32.xlu0 %v863, %s876
        %v878 = vpop.permute.xlu0 %877
        %v879 = vmul.f32 %v322, %v828
        %v880 = vmul.f32 %v323, %v828
        %v881 = vmul.f32 %v324, %v832
        %v882 = vmul.f32 %v325, %v832
        %v883 = vmul.f32 %v326, %v836
        %v884 = vmul.f32 %v327, %v836
        %v885 = vmul.f32 %v328, %v840
        %v886 = vmul.f32 %v329, %v840
        %v887 = vmul.f32 %v330, %v847
        %v888 = vmul.f32 %v331, %v847
        %v889 = vmul.f32 %v332, %v851
        %v890 = vmul.f32 %v333, %v851
        %v891 = vmul.f32 %v334, %v855
        %v892 = vmul.f32 %v335, %v855
        %v893 = vmul.f32 %v336, %v859
        %v894 = vmul.f32 %v337, %v859
        %v895 = vmul.f32 %v338, %v866
        %v896 = vmul.f32 %v339, %v866
        %v897 = vmul.f32 %v340, %v870
        %v898 = vmul.f32 %v341, %v870
        %v899 = vmul.f32 %v342, %v874
        %v900 = vmul.f32 %v343, %v874
        %v901 = vmul.f32 %v344, %v878
        %v902 = vmul.f32 %v345, %v878
        %v903 = vmul.f32 %v322, %v811
        %v904 = vmul.f32 %v323, %v813
        %v905 = vmul.f32 %v324, %v811
        %v906 = vmul.f32 %v325, %v813
        %v907 = vmul.f32 %v326, %v811
        %v908 = vmul.f32 %v327, %v813
        %v909 = vmul.f32 %v328, %v811
        %v910 = vmul.f32 %v329, %v813
        %v911 = vmul.f32 %v330, %v815
        %v912 = vmul.f32 %v331, %v817
        %v913 = vmul.f32 %v332, %v815
        %v914 = vmul.f32 %v333, %v817
        %v915 = vmul.f32 %v334, %v815
        %v916 = vmul.f32 %v335, %v817
        %v917 = vmul.f32 %v336, %v815
        %v918 = vmul.f32 %v337, %v817
        %v919 = vmul.f32 %v338, %v819
        %v920 = vmul.f32 %v339, %v821
        %v921 = vmul.f32 %v340, %v819
        %v922 = vmul.f32 %v341, %v821
        %v923 = vmul.f32 %v342, %v819
        %v924 = vmul.f32 %v343, %v821
        %v925 = vmul.f32 %v344, %v819
        %v926 = vmul.f32 %v345, %v821
        %v927 = vadd.f32 %v879, %v903
        %v928 = vadd.f32 %v880, %v904
        %v929 = vadd.f32 %v881, %v905
        %v930 = vadd.f32 %v882, %v906
        %v931 = vadd.f32 %v883, %v907
        %v932 = vadd.f32 %v884, %v908
        %v933 = vadd.f32 %v885, %v909
        %v934 = vadd.f32 %v886, %v910
        %v935 = vadd.f32 %v887, %v911
        %v936 = vadd.f32 %v888, %v912
        %v937 = vadd.f32 %v889, %v913
        %v938 = vadd.f32 %v890, %v914
        %v939 = vadd.f32 %v891, %v915
        %v940 = vadd.f32 %v892, %v916
        %v941 = vadd.f32 %v893, %v917
        %v942 = vadd.f32 %v894, %v918
        %v943 = vadd.f32 %v895, %v919
        %v944 = vadd.f32 %v896, %v920
        %v945 = vadd.f32 %v897, %v921
        %v946 = vadd.f32 %v898, %v922
        %v947 = vadd.f32 %v899, %v923
        %v948 = vadd.f32 %v900, %v924
        %v949 = vadd.f32 %v901, %v925
        %v950 = vadd.f32 %v902, %v926
        %951 = vst [vmem:[%s307] sm:$0xff] %v927
        %952 = vst.msk [vmem:[%s307 + $0x8] sm:$0xff] %vm346, %v928
        %953 = vst [vmem:[%s307 + $0x10] sm:$0xff] %v929
        %954 = vst.msk [vmem:[%s307 + $0x18] sm:$0xff] %vm346, %v930
        %955 = vst [vmem:[%s307 + $0x20] sm:$0xff] %v931
        %956 = vst.msk [vmem:[%s307 + $0x28] sm:$0xff] %vm346, %v932
        %957 = vst [vmem:[%s307 + $0x30] sm:$0xff] %v933
        %958 = vst.msk [vmem:[%s307 + $0x38] sm:$0xff] %vm346, %v934
        %959 = vst [vmem:[%s307 + $0x40] sm:$0xff] %v935
        %960 = vst.msk [vmem:[%s307 + $0x48] sm:$0xff] %vm346, %v936
        %961 = vst [vmem:[%s307 + $0x50] sm:$0xff] %v937
        %962 = vst.msk [vmem:[%s307 + $0x58] sm:$0xff] %vm346, %v938
        %963 = vst [vmem:[%s307 + $0x60] sm:$0xff] %v939
        %964 = vst.msk [vmem:[%s307 + $0x68] sm:$0xff] %vm346, %v940
        %965 = vst [vmem:[%s307 + $0x70] sm:$0xff] %v941
        %966 = vst.msk [vmem:[%s307 + $0x78] sm:$0xff] %vm346, %v942
        %967 = vst [vmem:[%s307 + $0x80] sm:$0xff] %v943
        %968 = vst.msk [vmem:[%s307 + $0x88] sm:$0xff] %vm346, %v944
        %969 = vst [vmem:[%s307 + $0x90] sm:$0xff] %v945
        %970 = vst.msk [vmem:[%s307 + $0x98] sm:$0xff] %vm346, %v946
        %971 = vst [vmem:[%s307 + $0xa0] sm:$0xff] %v947
        %972 = vst.msk [vmem:[%s307 + $0xa8] sm:$0xff] %vm346, %v948
        %973 = vst [vmem:[%s307 + $0xb0] sm:$0xff] %v949
        %974 = vst.msk [vmem:[%s307 + $0xb8] sm:$0xff] %vm346, %v950
        %s975 = sand.u32 %s185, 1
        %s976 = scalar_lea.sflag [#allocation5], %s975
        %s977 = sand.u32 %s185, 1
        %s978 = smul.addr %s977, 192
        %s979 = scalar_lea.vmem [#allocation6], %s978
        // Predicated region
        $region53: #{tpu_custom_call.1} parent=47 // pred_check
          %p980 = pneg %p195
        $region54: #{tpu_custom_call.1} parent=47 // pred_check_branch
          %982 = sbr.rel (%p980) target = $region56
        $region55: #{tpu_custom_call.1} parent=47 // pred_region
          %s983 = smul.u32 3, %s25
          %s984 = ssub.s32 4, %s983
          %p985 = scmp.lt.s32.totalorder %s984, 3
          %s986 = scalar_select %p985, %s984, 3
          %s987 = smul.u32 128, %s986
          %s988 = smul.u32 %s987, 4
          %s989 = smul.u32 %s988, 2
          %s991 = ssub.s32 3072, %s989
          %992 = vsyncadd %s976, %s991
          %p993 = scmp.ne.s32.totalorder 0, %s989
          %s994 = smul.addr %s983, 8
          %s995 = smul.addr %s994, 128
          %s996 = scalar_lea.hbm %s7, %s995
          %s997 = smul.u32 %s986, 4
          %s998 = smul.u32 16, %s997
          %s999 = sshll.u32 %s979, 4
          %s1000 = int_to_ptr.vmem [resolvable:$true] %s999
          %s1001 = sshll.u32 %s998, 4
          %1005 = dma.vmem_to_hbm [thread:$0]  (%p993), %s1000, %s1001, %s996, %s976, 256, 256, 16
        $region56: #{tpu_custom_call.1} parent=47 // pred_fallthru
          _
      $region48: #{tpu_custom_call.1} parent=5 // pred_fallthru
        _
      %p1006 = scmp.le.s32.totalorder 2, %s20
      // Predicated region
      $region57: #{tpu_custom_call.1} parent=5 // pred_check
        %p1007 = pneg %p1006
      $region58: #{tpu_custom_call.1} parent=5 // pred_check_branch
        %1009 = sbr.rel (%p1007) target = $region60
      $region59: #{tpu_custom_call.1} parent=5 // pred_region
        %s1010 = ssub.s32 %s20, 2
        // Predicated region
        $region61: #{tpu_custom_call.1} parent=59 // pred_check
          %p1011 = pneg %p201
        $region62: #{tpu_custom_call.1} parent=59 // pred_check_branch
          %1013 = sbr.rel (%p1011) target = $region64
        $region63: #{tpu_custom_call.1} parent=59 // pred_region
          %s1014 = sand.u32 %s186, 1
          %s1015 = scalar_lea.sflag [#allocation5], %s1014
          %s1016 = sand.u32 %s186, 1
          %s1017 = smul.addr %s1016, 192
          %s1018 = scalar_lea.vmem [#allocation6], %s1017
          %1019 = dma.done %s1015, 3072
        $region64: #{tpu_custom_call.1} parent=59 // pred_fallthru
          _
      $region60: #{tpu_custom_call.1} parent=5 // pred_fallthru
        _
    $region6: #{tpu_custom_call.1} parent=1 // loop_footer
      %s24 = sadd.s32 1, %s20
    $region7: #{tpu_custom_call.1} parent=1 // loop_footer_branch
      %19 = sbr.rel target = $region3
    $region8: #{tpu_custom_call.1} parent=1 // loop_exit
      _
    %1020 = vsyncpa [#allocation4], 1
    %s1021 = scalar_lea.sflag [#allocation4], 1
    %1022 = vsyncpa %s1021, 1
    %1023 = vsyncpa [#allocation5], 1
    %s1024 = scalar_lea.sflag [#allocation5], 1
    %1025 = vsyncpa %s1024, 1

</llo_original>
